<compile_context>
chip_gen: v5e
topology: v5e:2x2
jax: 0.10.0
libtpu: 0.0.40
codegen_flags: <defaults>
</compile_context>

<pallas_src>
import functools

import jax
import jax.numpy as jnp
from jax.experimental import pallas as pl
from jax.experimental.pallas import tpu as pltpu


def _residual_pointwise_kernel(x_ref, w_ref, b_ref, o_ref):
    """out = gelu(W @ x + b) + x; pixels lane-dense, packed channels on sublanes."""
    x = x_ref[0]                                    # (Cb, tile), native dtype
    w = w_ref[...]                                  # (Cb, Cb), block-diag, x's dtype
    # 1x1 conv == channel matmul per pixel (MXU), f32 accumulation.
    y = jnp.dot(w, x, preferred_element_type=jnp.float32)
    y = y + b_ref[...]                              # bias kept in f32
    # tanh-approx GELU (matches the reference below; see header note on erf).
    y = jax.nn.gelu(y, approximate=True)
    # Residual add against the un-activated input: fn(x) + x
    o_ref[0] = (y + x.astype(jnp.float32)).astype(o_ref.dtype)


def residual_pointwise(x_nchw, w, b, *, target_block_bytes=2 << 20):
    """Residual(fn)(x) with fn = GELU(Conv2d(C, C, 1)), fused in one Pallas kernel.

    x_nchw: (N, C, H, W)  PyTorch NCHW layout (f32 or bf16)
    w:      (C, C)        1x1 conv weight, (out_ch, in_ch)
    b:      (C,)          1x1 conv bias
    """
    N, C, H, W = x_nchw.shape
    HW = H * W
    itemsize = x_nchw.dtype.itemsize

    # ---- pack batch images into the channel block when C is tiny (< 8 sublanes) ----
    if C < 8:
        cap = max(1, 8 // C)
        B_blk = next(bb for bb in range(min(N, cap), 0, -1) if N % bb == 0)
    else:
        B_blk = 1
    NB = N // B_blk
    Cb = B_blk * C

    x3 = x_nchw.reshape(NB, Cb, HW)                       # free reshape (contiguous)
    # Block-diagonal weight applies the per-image 1x1 conv to the packed block.
    w_bd = jnp.kron(jnp.eye(B_blk, dtype=w.dtype), w).astype(x_nchw.dtype)
    b_bd = jnp.tile(b.astype(jnp.float32), B_blk).reshape(Cb, 1)

    # ---- byte-sized, lane-dense pixel tile ----
    hw_padded = pl.cdiv(HW, 128) * 128
    tile = (target_block_bytes // (Cb * itemsize)) // 128 * 128
    tile = max(128, min(tile, hw_padded))

    # ---- generation-aware VMEM budget (v7x: 64 MiB/TC, v5e/v6e: 128 MiB) ----
    try:
        vmem_cap = pltpu.get_tpu_info().vmem_capacity_bytes
    except Exception:  # pragma: no cover - conservative fallback
        vmem_cap = 64 << 20
    budget = int(vmem_cap * 0.45)                         # headroom for compiler scratch
    w_bytes = 2 * Cb * Cb * w_bd.dtype.itemsize + 2 * Cb * 128 * 4   # resident W + bias
    stream_bytes_per_col = 2 * 2 * Cb * itemsize          # x + out, double-buffered
    max_tile = max(128, ((budget - w_bytes) // stream_bytes_per_col) // 128 * 128)
    tile = min(tile, max_tile)

    needed = 2 * 2 * Cb * tile * itemsize + w_bytes
    vmem_limit = int(min(vmem_cap * 0.9, needed + (16 << 20)))
    vmem_limit = max(vmem_limit, 16 << 20)

    # Pixel-tile axis first so megacore (v7x) splits the large axis, not the batch.
    grid = (pl.cdiv(HW, tile), NB)

    out3 = pl.pallas_call(
        _residual_pointwise_kernel,
        out_shape=jax.ShapeDtypeStruct((NB, Cb, HW), x3.dtype),
        grid_spec=pltpu.PrefetchScalarGridSpec(
            num_scalar_prefetch=0,
            grid=grid,
            in_specs=[
                # x tile: (1, Cb, tile) — batch index squeezed via x_ref[0]
                pl.BlockSpec((1, Cb, tile), lambda p, n: (n, 0, p)),
                # full block-diag weight, constant index_map => fetched once, resident
                pl.BlockSpec((Cb, Cb), lambda p, n: (0, 0)),
                # bias column, also resident
                pl.BlockSpec((Cb, 1), lambda p, n: (0, 0)),
            ],
            out_specs=pl.BlockSpec((1, Cb, tile), lambda p, n: (n, 0, p)),
        ),
        compiler_params=pltpu.CompilerParams(
            dimension_semantics=("parallel", "parallel"),
            vmem_limit_bytes=vmem_limit,
        ),
    )(x3, w_bd, b_bd)

    return out3.reshape(N, C, H, W)


def _reference(x_nchw, w, b):
    """Pure-JAX reference of fn(x) + x with the same fn (NCHW-native)."""
    N, C, H, W = x_nchw.shape
    x = x_nchw.reshape(N, C, H * W).astype(jnp.float32)
    y = jnp.einsum("oi,nip->nop", w.astype(jnp.float32), x) + b[None, :, None]
    y = jax.nn.gelu(y, approximate=True) + x
    return y.reshape(N, C, H, W).astype(x_nchw.dtype)


if __name__ == "__main__":
    key = jax.random.PRNGKey(0)
    kx, kw, kb = jax.random.split(key, 3)

    N, C, H, W = 2, 4, 16, 16
    x = jax.random.normal(kx, (N, C, H, W), dtype=jnp.float32)
    # Deterministic "Conv2d(C, C, 1)" parameters (synthetic init, no checkpoint).
    w = jax.random.normal(kw, (C, C), dtype=jnp.float32) * (1.0 / jnp.sqrt(C))
    b = jax.random.normal(kb, (C,), dtype=jnp.float32) * 0.1

    fn = jax.jit(functools.partial(residual_pointwise, target_block_bytes=2 << 20))
    out = fn(x, w, b)
    jax.block_until_ready(out)

    ref = _reference(x, w, b)
    assert out.shape == x.shape and out.dtype == x.dtype
    assert jnp.allclose(out, ref, atol=1e-5, rtol=1e-5), "mismatch vs reference"

    print("KERNEL_OK")
</pallas_src>

<mosaic_0001>
module attributes {stable_mosaic.version = 11 : i64} {
  func.func @_residual_pointwise_kernel(%arg0: i32, %arg1: i32, %arg2: memref<1x8x256xf32, #tpu.memory_space<vmem>>, %arg3: memref<8x8xf32, #tpu.memory_space<vmem>>, %arg4: memref<8x1xf32, #tpu.memory_space<vmem>>, %arg5: memref<1x8x256xf32, #tpu.memory_space<vmem>>) attributes {dimension_semantics = [#tpu.dimension_semantics<parallel>, #tpu.dimension_semantics<parallel>], iteration_bounds = array<i64: 1, 1>, scalar_prefetch = 0 : i64, scratch_operands = 0 : i64, tpu.core_type = #tpu.core_type<tc>, window_params = [{transform_indices = @transform_0, window_bounds = array<i64: 1, 8, 256>}, {pipeline_mode = #tpu.pipeline_mode<synchronous>, transform_indices = @transform_1, window_bounds = array<i64: 8, 8>}, {pipeline_mode = #tpu.pipeline_mode<synchronous>, transform_indices = @transform_2, window_bounds = array<i64: 8, 1>}, {transform_indices = @transform_3, window_bounds = array<i64: 1, 8, 256>}]} {
    %c0 = arith.constant 0 : index
    %c0_0 = arith.constant 0 : index
    %c0_1 = arith.constant 0 : index
    %0 = vector.load %arg2[%c0, %c0_0, %c0_1] : memref<1x8x256xf32, #tpu.memory_space<vmem>>, vector<1x8x256xf32>
    %1 = vector.shape_cast %0 : vector<1x8x256xf32> to vector<8x256xf32>
    %c0_2 = arith.constant 0 : index
    %c0_3 = arith.constant 0 : index
    %2 = vector.load %arg3[%c0_2, %c0_3] : memref<8x8xf32, #tpu.memory_space<vmem>>, vector<8x8xf32>
    %cst = arith.constant dense<0.000000e+00> : vector<8x256xf32>
    %3 = tpu.matmul %2, %1, %cst {dimension_numbers = #tpu.dot_dimension_numbers<[1], [0], [0], [1], [0, 0, 1, 1], [], []>} : vector<8x8xf32>, vector<8x256xf32>, vector<8x256xf32> -> vector<8x256xf32>
    %c0_4 = arith.constant 0 : index
    %c0_5 = arith.constant 0 : index
    %4 = vector.load %arg4[%c0_4, %c0_5] : memref<8x1xf32, #tpu.memory_space<vmem>>, vector<8x1xf32>
    %5 = vector.broadcast %4 : vector<8x1xf32> to vector<8x256xf32>
    %6 = arith.addf %3, %5 : vector<8x256xf32>
    %7 = arith.mulf %6, %6 : vector<8x256xf32>
    %8 = arith.mulf %6, %7 : vector<8x256xf32>
    %cst_6 = arith.constant 4.471500e-02 : f32
    %9 = vector.broadcast %cst_6 : f32 to vector<8x256xf32>
    %10 = arith.mulf %9, %8 : vector<8x256xf32>
    %11 = arith.addf %6, %10 : vector<8x256xf32>
    %cst_7 = arith.constant 0.797884583 : f32
    %12 = vector.broadcast %cst_7 : f32 to vector<8x256xf32>
    %13 = arith.mulf %12, %11 : vector<8x256xf32>
    %14 = math.tanh %13 : vector<8x256xf32>
    %cst_8 = arith.constant 1.000000e+00 : f32
    %15 = vector.broadcast %cst_8 : f32 to vector<8x256xf32>
    %16 = arith.addf %15, %14 : vector<8x256xf32>
    %cst_9 = arith.constant 5.000000e-01 : f32
    %17 = vector.broadcast %cst_9 : f32 to vector<8x256xf32>
    %18 = arith.mulf %17, %16 : vector<8x256xf32>
    %19 = arith.mulf %6, %18 : vector<8x256xf32>
    %20 = arith.addf %19, %1 : vector<8x256xf32>
    %c0_10 = arith.constant 0 : index
    %c0_11 = arith.constant 0 : index
    %c0_12 = arith.constant 0 : index
    %21 = vector.load %arg5[%c0_10, %c0_11, %c0_12] : memref<1x8x256xf32, #tpu.memory_space<vmem>>, vector<1x8x256xf32>
    %22 = vector.shape_cast %21 : vector<1x8x256xf32> to vector<8x256xf32>
    %23 = vector.shape_cast %20 : vector<8x256xf32> to vector<1x8x256xf32>
    tpu.vector_store %arg5[%c0_10, %c0_11, %c0_12], %23 {strides = array<i32>} : memref<1x8x256xf32, #tpu.memory_space<vmem>>, vector<1x8x256xf32>,
    return
  }
  func.func @transform_0(%arg0: i32, %arg1: i32) -> (i32, i32, i32) {
    %c0_i32 = arith.constant 0 : i32
    %c0_i32_0 = arith.constant 0 : i32
    return %arg1, %c0_i32, %arg0 : i32, i32, i32
  }
  func.func @transform_1(%arg0: i32, %arg1: i32) -> (i32, i32) {
    %c0_i32 = arith.constant 0 : i32
    %c0_i32_0 = arith.constant 0 : i32
    %c0_i32_1 = arith.constant 0 : i32
    return %c0_i32, %c0_i32_0 : i32, i32
  }
  func.func @transform_2(%arg0: i32, %arg1: i32) -> (i32, i32) {
    %c0_i32 = arith.constant 0 : i32
    %c0_i32_0 = arith.constant 0 : i32
    %c0_i32_1 = arith.constant 0 : i32
    return %c0_i32, %c0_i32_0 : i32, i32
  }
  func.func @transform_3(%arg0: i32, %arg1: i32) -> (i32, i32, i32) {
    %c0_i32 = arith.constant 0 : i32
    %c0_i32_0 = arith.constant 0 : i32
    return %arg1, %c0_i32, %arg0 : i32, i32, i32
  }
}

</mosaic_0001>

<llo_original>
// kernel: tile.8
$region0: #{tile.8}
  #allocation0 [shape = 's32[1]{0}', space=sflag, size = 0x4, scoped, tag = 'scoped memory for tile.8']
  %s0 = inlined_call_operand.vmem [shape: f32[4], index: 0, kind: input, shape index: {}]
  %s1 = inlined_call_operand.vmem [shape: f32[2,4], index: 1, kind: output, shape index: {}]
  // Predicated region
  $region2: #{tile.8} parent=0 // pred_check
    _
  $region3: #{tile.8} parent=0 // pred_check_branch
    %3 = sbr.rel (0) target = $region5
  $region4: #{tile.8} parent=0 // pred_region
    _
  $region5: #{tile.8} parent=0 // pred_fallthru
    _
  %v4 = vld [vmem:[%s0] ss:$0 sm:$0xff]
  %5 = vst [vmem:[%s1] sm:$0x3] %v4

// kernel: tile.0
$region0: #{tile.0}
  %s0 = inlined_call_operand.vmem [shape: f32[2,4], index: 0, kind: input, shape index: {}]
  %s1 = inlined_call_operand.vmem [shape: f32[8,1], index: 1, kind: output, shape index: {}]
  $region1: #{tile.0} parent=0
    #allocation0 [shape = 'u8[4096]{0}', space=vmem, size = 0x1000, scoped, tag = 'scoped mem for input reshape']
    %s3 = ssub.s32 4, 1
    %v4 = vld [vmem:[%s0] sm:%s3]
    %5 = vst [vmem:[#allocation0] sm:%s3] %v4
    %v6 = vld [vmem:[#allocation0] sm:$0x3]
    %vm7 = vcmask 7168
    %8 = vst.msk [vmem:[%s1] ss:$4 sm:$0x3] %vm7, %v6
    %v9 = vld [vmem:[#allocation0] sm:$0x3]
    %10 = vrot.lane.b32.xlu0 %v9, 127
    %v11 = vpop.permute.xlu0 %10
    %vm12 = vcmask 7168
    %s13 = scalar_lea.vmem %s1, 1
    %14 = vst.msk [vmem:[%s13] ss:$4 sm:$0x3] %vm12, %v11
    %v15 = vld [vmem:[#allocation0] sm:$0x3]
    %16 = vrot.lane.b32.xlu0 %v15, 126
    %v17 = vpop.permute.xlu0 %16
    %vm18 = vcmask 7168
    %s19 = scalar_lea.vmem %s1, 2
    %20 = vst.msk [vmem:[%s19] ss:$4 sm:$0x3] %vm18, %v17
    %v21 = vld [vmem:[#allocation0] sm:$0x3]
    %22 = vrot.lane.b32.xlu0 %v21, 125
    %v23 = vpop.permute.xlu0 %22
    %vm24 = vcmask 7168
    %s25 = scalar_lea.vmem %s1, 3
    %26 = vst.msk [vmem:[%s25] ss:$4 sm:$0x3] %vm24, %v23

// kernel: residual_pointwise.1
$region0: #{residual_pointwise.1}
  #allocation0 [shape = 'u32[]', space=smem, size = 0x4, offset = 0x4, fixed_abs, tag = 'smem constant byte address 0x4 - core index']
  #allocation1 [shape = 'u32[72,128]{1,0:T(1,128)}', space=vmem, size = 0x9000, scoped, tag = 'internal scratch']
  %s0 = inlined_call_operand.vmem [shape: f32[1,8,256], index: 0, kind: input, shape index: {}]
  %s1 = inlined_call_operand.vmem [shape: f32[8,8], index: 1, kind: input, shape index: {}]
  %s2 = inlined_call_operand.vmem [shape: f32[8,1], index: 2, kind: input, shape index: {}]
  %s3 = inlined_call_operand.vmem [shape: f32[1,8,256], index: 3, kind: output, shape index: {}]
  %s4 = sld [smem:[#allocation0]]
  $region22: #{residual_pointwise.1} parent=0
    _
  %s6 = ssub.s32 1, %s4
  %s7 = scalar_select 0, %s6, %s4
  // Predicated region
  $region2: #{residual_pointwise.1} parent=0 // pred_check
    _
  $region3: #{residual_pointwise.1} parent=0 // pred_check_branch
    %9 = sbr.rel (0) target = $region5
  $region4: #{residual_pointwise.1} parent=0 // pred_region
    _
  $region5: #{residual_pointwise.1} parent=0 // pred_fallthru
    _
  // Predicated region
  $region6: #{residual_pointwise.1} parent=0 // pred_check
    _
  $region7: #{residual_pointwise.1} parent=0 // pred_check_branch
    %11 = sbr.rel (0) target = $region9
  $region8: #{residual_pointwise.1} parent=0 // pred_region
    _
  $region9: #{residual_pointwise.1} parent=0 // pred_fallthru
    _
  // Predicated region
  $region10: #{residual_pointwise.1} parent=0 // pred_check
    _
  $region11: #{residual_pointwise.1} parent=0 // pred_check_branch
    %13 = sbr.rel (0) target = $region13
  $region12: #{residual_pointwise.1} parent=0 // pred_region
    _
  $region13: #{residual_pointwise.1} parent=0 // pred_fallthru
    _
  %v14 = vld [vmem:[%s0] sm:$0xff]
  %v15 = vld [vmem:[%s0 + $0x8] sm:$0xff]
  %v16 = vld [vmem:[%s1] sm:$0xff]
  %v17 = vld [vmem:[%s2] sm:$0xff]
  %19 = vset.pattern.permute.xlu0 0
  %20 = vperm.xlu0 %19, %v17
  %v21 = vpop.permute.xlu0 %20
  %vm23 = vcmask 64512
  %v25 = vsel %vm23, %v16, 0
  %27 = vmatpush.msra.mxu0 0.0
  %28 = vmatpush.msra.mxu0 0.0
  %29 = vmatpush.msra.mxu0 0.0
  %30 = vmatpush.msra.mxu0 0.0
  %31 = vmatpush.msra.mxu0 0.0
  %32 = vmatpush.msra.mxu0 0.0
  %33 = vmatpush.msra.mxu0 0.0
  %34 = vmatpush.msra.mxu0 0.0
  %35 = vmatpush.msra.mxu0 0.0
  %36 = vmatpush.msra.mxu0 0.0
  %37 = vmatpush.msra.mxu0 0.0
  %38 = vmatpush.msra.mxu0 0.0
  %39 = vmatpush.msra.mxu0 0.0
  %40 = vmatpush.msra.mxu0 0.0
  %41 = vmatpush.msra.mxu0 0.0
  %42 = vmatpush.msra.mxu0 %v14
  %43 = vmatmul.f32.gmra.mxu0 %v25
  %v44 = vpop.f32.mrf.mxu0
  %v45 = vadd.f32 %v21, %v44
  %46 = vdwg.mxu0
  %47 = vmatpush.msra.mxu0 0.0
  %48 = vmatpush.msra.mxu0 0.0
  %49 = vmatpush.msra.mxu0 0.0
  %50 = vmatpush.msra.mxu0 0.0
  %51 = vmatpush.msra.mxu0 0.0
  %52 = vmatpush.msra.mxu0 0.0
  %53 = vmatpush.msra.mxu0 0.0
  %54 = vmatpush.msra.mxu0 0.0
  %55 = vmatpush.msra.mxu0 0.0
  %56 = vmatpush.msra.mxu0 0.0
  %57 = vmatpush.msra.mxu0 0.0
  %58 = vmatpush.msra.mxu0 0.0
  %59 = vmatpush.msra.mxu0 0.0
  %60 = vmatpush.msra.mxu0 0.0
  %61 = vmatpush.msra.mxu0 0.0
  %62 = vmatpush.msra.mxu0 %v15
  %63 = vmatmul.f32.gmra.mxu0 %v25
  %v64 = vpop.f32.mrf.mxu0
  %v65 = vadd.f32 %v21, %v64
  %66 = vdwg.mxu0
  %v67 = vmul.f32 %v45, %v45
  %v68 = vmul.f32 %v65, %v65
  %v69 = vmul.f32 %v45, %v67
  %v70 = vmul.f32 %v65, %v68
  %v71 = vmul.f32 %v69, 0.044715
  %v72 = vmul.f32 %v70, 0.044715
  %v73 = vadd.f32 %v45, %v71
  %v74 = vadd.f32 %v65, %v72
  %v75 = vmul.f32 %v73, 0.7978846
  %v76 = vmul.f32 %v74, 0.7978846
  %v77 = vtanh.pop %v75
  %v78 = vtanh.pop %v76
  %v79 = vadd.f32 %v77, 1.0
  %v80 = vadd.f32 %v78, 1.0
  %v81 = vmul.f32 %v79, 0.5
  %v82 = vmul.f32 %v80, 0.5
  %v83 = vmul.f32 %v45, %v81
  %v84 = vmul.f32 %v65, %v82
  %v85 = vadd.f32 %v83, %v14
  %v86 = vadd.f32 %v84, %v15
  %87 = vst [vmem:[%s3] sm:$0xff] %v85
  %88 = vst [vmem:[%s3 + $0x8] sm:$0xff] %v86
  // Predicated region
  $region14: #{residual_pointwise.1} parent=0 // pred_check
    _
  $region15: #{residual_pointwise.1} parent=0 // pred_check_branch
    %90 = sbr.rel (0) target = $region17
  $region16: #{residual_pointwise.1} parent=0 // pred_region
    _
  $region17: #{residual_pointwise.1} parent=0 // pred_fallthru
    _
  // Predicated region
  $region18: #{residual_pointwise.1} parent=0 // pred_check
    _
  $region19: #{residual_pointwise.1} parent=0 // pred_check_branch
    %92 = sbr.rel (0) target = $region21
  $region20: #{residual_pointwise.1} parent=0 // pred_region
    _
  $region21: #{residual_pointwise.1} parent=0 // pred_fallthru
    _

</llo_original>
